<compile_context>
chip_gen: v5e
topology: v5e:2x2
jax: 0.10.0
libtpu: 0.0.40
codegen_flags: <defaults>
</compile_context>

<pallas_src>
import functools

import numpy as np
import jax
import jax.numpy as jnp
from jax.experimental import pallas as pl
from jax.experimental.pallas import tpu as pltpu

_WIN = 11
_SIGMA = 1.5
_C1 = 0.01 ** 2
_C2 = 0.03 ** 2


def _round_up(x: int, n: int) -> int:
    return ((x + n - 1) // n) * n


def _gaussian_blur_matrix(size: int) -> np.ndarray:
    """B such that (B @ x) along rows == 1-D gaussian conv (zero padded)."""
    pad = _WIN // 2
    g = np.exp(-((np.arange(_WIN) - pad) ** 2) / (2.0 * _SIGMA ** 2))
    g = g / g.sum()
    idx = np.arange(size)
    k = idx[None, :] - idx[:, None] + pad            # j - i + pad
    valid = (k >= 0) & (k < _WIN)
    B = np.where(valid, g[np.clip(k, 0, _WIN - 1)], 0.0)
    return B.astype(np.float32)                      # symmetric (gaussian is even)


# ----------------------------- BCE-with-logits ------------------------------

_BCE_TARGET_ROWS = 512   # (512, lanes<=512) f32 block = <=1 MiB / input / buffer


def _bce_kernel(x_ref, y_ref, o_ref, *, valid_rows_last, need_mask):
    x = x_ref[...].astype(jnp.float32)
    y = y_ref[...].astype(jnp.float32)
    # numerically stable BCE-with-logits: max(x,0) - x*y + log1p(exp(-|x|))
    per = jnp.maximum(x, 0.0) - x * y + jnp.log1p(jnp.exp(-jnp.abs(x)))
    # per-block partial sum written as a lane-dense tile; reduced in JAX.
    o_ref[...] = jnp.broadcast_to(jnp.sum(per), (1, 8, 128))
    if need_mask:
        # Only the LAST grid step owns the padded edge block; gate the
        # iota/compare/select (and its vreg pressure) on that step only.
        @pl.when(pl.program_id(0) == pl.num_programs(0) - 1)
        def _():
            row_ids = jax.lax.broadcasted_iota(jnp.int32, per.shape, 0)
            masked = jnp.where(row_ids < valid_rows_last, per, 0.0)
            o_ref[...] = jnp.broadcast_to(jnp.sum(masked), (1, 8, 128))


def bce_with_logits_mean(pred, label):
    total = int(np.prod(pred.shape))

    # Lane-dense trailing extent that divides the element count -> plain (free)
    # reshape, no jnp.pad copy of the inputs.
    lanes = next((c for c in (512, 384, 256, 128) if total % c == 0), None)
    if lanes is None:
        # Odd tail: one-time pad with values whose per-element loss is exactly
        # 0 (logit << 0, label 0), so the tail never needs in-kernel masking.
        lanes = 128
        pad = (-total) % lanes
        x = jnp.pad(pred.reshape(-1), (0, pad), constant_values=-1e4)
        y = jnp.pad(label.reshape(-1), (0, pad), constant_values=0.0)
        rows = (total + pad) // lanes
        x2, y2 = x.reshape(rows, lanes), y.reshape(rows, lanes)
    else:
        rows = total // lanes
        x2, y2 = pred.reshape(rows, lanes), label.reshape(rows, lanes)

    if rows < 16:
        block_rows = rows                 # single full-extent block
    else:
        # big blocks (amortize per-step overhead) but keep grid >= 2 so the
        # "parallel" axis can be sharded across both v7x TensorCores.
        block_rows = min(_BCE_TARGET_ROWS, _round_up(pl.cdiv(rows, 2), 8))
    grid = pl.cdiv(rows, block_rows)
    need_mask = (grid * block_rows != rows)
    valid_rows_last = rows - (grid - 1) * block_rows

    out = pl.pallas_call(
        functools.partial(_bce_kernel, valid_rows_last=valid_rows_last,
                          need_mask=need_mask),
        out_shape=jax.ShapeDtypeStruct((grid, 8, 128), jnp.float32),
        grid=(grid,),
        in_specs=[
            pl.BlockSpec((block_rows, lanes), lambda i: (i, 0)),
            pl.BlockSpec((block_rows, lanes), lambda i: (i, 0)),
        ],
        out_specs=pl.BlockSpec((1, 8, 128), lambda i: (i, 0, 0)),
        compiler_params=pltpu.CompilerParams(dimension_semantics=("parallel",)),
    )(x2, y2)
    return out[:, 0, 0].sum() / total


# ----------------------------------- SSIM -----------------------------------

def _ssim_kernel(x_ref, y_ref, bh_ref, bw_ref, o_ref):
    x = x_ref[...].astype(jnp.float32)     # (b, H, W)
    y = y_ref[...].astype(jnp.float32)
    bh = bh_ref[...]                       # (H, H) bf16 banded gaussian (symmetric)
    bw = bw_ref[...]                       # (W, W) bf16
    b, h, w = x.shape

    # Fuse the 5 blur operands along axis 0 (sublanes): slices stay
    # tile-aligned and the W-blur collapses into ONE matmul.
    ops = jnp.concatenate(
        [x.astype(jnp.bfloat16), y.astype(jnp.bfloat16),
         (x * x).astype(jnp.bfloat16), (y * y).astype(jnp.bfloat16),
         (x * y).astype(jnp.bfloat16)], axis=0)                      # (5b, H, W)

    # W-blur: single (5*b*H, W) @ (W, W) bf16 matmul (f32 MXU accumulation).
    t = jnp.dot(ops.reshape(5 * b * h, w), bw,
                preferred_element_type=jnp.bfloat16).reshape(5 * b, h, w)

    # H-blur + elementwise SSIM tail, one image at a time (static unroll).
    # Plain 2-D dots: no broadcast_to of the blur matrix, no batched einsum.
    total = jnp.float32(0.0)
    for img in range(b):
        mu1 = jnp.dot(bh, t[img],         preferred_element_type=jnp.float32)
        mu2 = jnp.dot(bh, t[b + img],     preferred_element_type=jnp.float32)
        bxx = jnp.dot(bh, t[2 * b + img], preferred_element_type=jnp.float32)
        byy = jnp.dot(bh, t[3 * b + img], preferred_element_type=jnp.float32)
        bxy = jnp.dot(bh, t[4 * b + img], preferred_element_type=jnp.float32)

        mu1_sq = mu1 * mu1
        mu2_sq = mu2 * mu2
        mu12 = mu1 * mu2
        sigma1_sq = bxx - mu1_sq
        sigma2_sq = byy - mu2_sq
        sigma12 = bxy - mu12

        num = (2.0 * mu12 + _C1) * (2.0 * sigma12 + _C2)
        den = (mu1_sq + mu2_sq + _C1) * (sigma1_sq + sigma2_sq + _C2)
        total = total + jnp.sum(num / den)

    # per-step partial sum of the SSIM map, lane-dense tile; reduced in JAX.
    o_ref[...] = jnp.broadcast_to(total, (1, 8, 128))


def ssim_loss(pred, label):
    n, c, h, w = pred.shape
    m = n * c
    x = pred.reshape(m, h, w)      # free reshapes; dtype casts happen in-kernel
    y = label.reshape(m, h, w)

    # Per-step image batch b: a DIVISOR of m (no jnp.pad copy), capped by a
    # VMEM budget derived from the device generation, and leaving >= 2 grid
    # steps whenever m >= 2 (v7x has 2 TensorCores to shard the parallel axis).
    per_img_bytes = 88 * h * w     # x/y (double-buffered) + fused bf16 ops + blur intermediates
    try:
        vmem_cap = int(getattr(pltpu.get_tpu_info(), "vmem_capacity_bytes", 64 << 20))
    except Exception:
        vmem_cap = 64 << 20
    if vmem_cap >= (96 << 20):     # v5e / v6e: 128 MiB physical VMEM
        budget, vmem_limit = 32 << 20, 64 << 20
    else:                          # v7x: 64 MiB physical, 32 MiB default scope
        budget, vmem_limit = 16 << 20, 32 << 20

    b_cap = max(1, min(m, budget // per_img_bytes))
    if m >= 2:
        b_cap = max(1, min(b_cap, m // 2))
    b = next(d for d in range(b_cap, 0, -1) if m % d == 0)
    grid = m // b

    bh = jnp.asarray(_gaussian_blur_matrix(h), dtype=jnp.bfloat16)
    bw = jnp.asarray(_gaussian_blur_matrix(w), dtype=jnp.bfloat16)

    out = pl.pallas_call(
        _ssim_kernel,
        out_shape=jax.ShapeDtypeStruct((grid, 8, 128), jnp.float32),
        grid=(grid,),
        in_specs=[
            pl.BlockSpec((b, h, w), lambda i: (i, 0, 0)),
            pl.BlockSpec((b, h, w), lambda i: (i, 0, 0)),
            pl.BlockSpec((h, h), lambda i: (0, 0)),
            pl.BlockSpec((w, w), lambda i: (0, 0)),
        ],
        out_specs=pl.BlockSpec((1, 8, 128), lambda i: (i, 0, 0)),
        compiler_params=pltpu.CompilerParams(
            dimension_semantics=("parallel",),
            vmem_limit_bytes=vmem_limit,
        ),
    )(x, y, bh, bw)

    ssim_mean = out[:, 0, 0].sum() / (m * h * w)
    return 1.0 - ssim_mean         # SSIM_Loss = 1 - mean(SSIM map)


# ------------------------------ combined loss -------------------------------

def bce_ssim_loss(prediction, label):
    bce = bce_with_logits_mean(prediction["bg_fg_mask"], label["bg_fg_mask"])
    ssim = ssim_loss(prediction["bg_fg_depth"], label["bg_fg_depth"])
    return bce + 2.0 * ssim


if __name__ == "__main__":
    key = jax.random.PRNGKey(0)
    k1, k2, k3, k4 = jax.random.split(key, 4)

    N, C, H, W = 2, 1, 16, 16  # single-channel mask / depth maps
    mask_pred = jax.random.normal(k1, (N, C, H, W), dtype=jnp.float32)             # logits
    mask_label = (jax.random.uniform(k2, (N, C, H, W)) > 0.5).astype(jnp.float32)  # {0,1}
    depth_pred = jax.random.uniform(k3, (N, C, H, W), dtype=jnp.float32)
    depth_label = jax.random.uniform(k4, (N, C, H, W), dtype=jnp.float32)

    prediction = {"bg_fg_mask": mask_pred, "bg_fg_depth": depth_pred}
    label = {"bg_fg_mask": mask_label, "bg_fg_depth": depth_label}

    loss = bce_ssim_loss(prediction, label)
    jax.block_until_ready(loss)
    print("KERNEL_OK")
</pallas_src>

<mosaic_0001>
module attributes {stable_mosaic.version = 11 : i64} {
  func.func @_bce_kernel(%arg0: i32, %arg1: memref<1x512xf32, #tpu.memory_space<vmem>>, %arg2: memref<1x512xf32, #tpu.memory_space<vmem>>, %arg3: memref<1x8x128xf32, #tpu.memory_space<vmem>>) attributes {dimension_semantics = [#tpu.dimension_semantics<parallel>], iteration_bounds = array<i64: 1>, scalar_prefetch = 0 : i64, scratch_operands = 0 : i64, tpu.core_type = #tpu.core_type<tc>, window_params = [{transform_indices = @transform_0, window_bounds = array<i64: 1, 512>}, {transform_indices = @transform_1, window_bounds = array<i64: 1, 512>}, {transform_indices = @transform_2, window_bounds = array<i64: 1, 8, 128>}]} {
    %c0 = arith.constant 0 : index
    %c0_0 = arith.constant 0 : index
    %0 = vector.load %arg1[%c0, %c0_0] : memref<1x512xf32, #tpu.memory_space<vmem>>, vector<1x512xf32>
    %c0_1 = arith.constant 0 : index
    %c0_2 = arith.constant 0 : index
    %1 = vector.load %arg2[%c0_1, %c0_2] : memref<1x512xf32, #tpu.memory_space<vmem>>, vector<1x512xf32>
    %cst = arith.constant 0.000000e+00 : f32
    %2 = vector.broadcast %cst : f32 to vector<1x512xf32>
    %3 = arith.maximumf %0, %2 : vector<1x512xf32>
    %4 = arith.mulf %0, %1 : vector<1x512xf32>
    %5 = arith.subf %3, %4 : vector<1x512xf32>
    %6 = math.absf %0 : vector<1x512xf32>
    %cst_3 = arith.constant 0.000000e+00 : f32
    %7 = vector.broadcast %cst_3 : f32 to vector<1x512xf32>
    %8 = arith.subf %7, %6 : vector<1x512xf32>
    %9 = math.exp %8 : vector<1x512xf32>
    %10 = math.log1p %9 : vector<1x512xf32>
    %11 = arith.addf %5, %10 : vector<1x512xf32>
    %12 = vector.shape_cast %11 : vector<1x512xf32> to vector<1x1x512xf32>
    %cst_4 = arith.constant dense<0.000000e+00> : vector<1xf32>
    %13 = vector.multi_reduction <add>, %12, %cst_4 [1, 2] : vector<1x1x512xf32> to vector<1xf32>
    %14 = vector.shape_cast %13 : vector<1xf32> to vector<1x1x1xf32>
    %15 = vector.extract %14[0, 0, 0] : f32 from vector<1x1x1xf32>
    %16 = vector.broadcast %15 : f32 to vector<1x8x128xf32>
    %c0_5 = arith.constant 0 : index
    %c0_6 = arith.constant 0 : index
    %c0_7 = arith.constant 0 : index
    %17 = vector.load %arg3[%c0_5, %c0_6, %c0_7] : memref<1x8x128xf32, #tpu.memory_space<vmem>>, vector<1x8x128xf32>
    tpu.vector_store %arg3[%c0_5, %c0_6, %c0_7], %16 {strides = array<i32>} : memref<1x8x128xf32, #tpu.memory_space<vmem>>, vector<1x8x128xf32>,
    return
  }
  func.func @transform_0(%arg0: i32) -> (i32, i32) {
    %c0_i32 = arith.constant 0 : i32
    %c0_i32_0 = arith.constant 0 : i32
    return %arg0, %c0_i32 : i32, i32
  }
  func.func @transform_1(%arg0: i32) -> (i32, i32) {
    %c0_i32 = arith.constant 0 : i32
    %c0_i32_0 = arith.constant 0 : i32
    return %arg0, %c0_i32 : i32, i32
  }
  func.func @transform_2(%arg0: i32) -> (i32, i32, i32) {
    %c0_i32 = arith.constant 0 : i32
    %c0_i32_0 = arith.constant 0 : i32
    %c0_i32_1 = arith.constant 0 : i32
    return %arg0, %c0_i32, %c0_i32_0 : i32, i32, i32
  }
}

</mosaic_0001>

<llo_original>
// kernel: tpu_custom_call.1
$region0: #{tpu_custom_call.1}
  #allocation0 [shape = 'u32[]', space=smem, size = 0x4, offset = 0x4, fixed_abs, tag = 'smem constant byte address 0x4 - core index']
  #allocation1 [shape = 'u32[72,128]{1,0:T(1,128)}', space=vmem, size = 0x9000, scoped, tag = 'internal scratch']
  %s0 = inlined_call_operand.hbm [shape: f32[1,512], index: 0, kind: input, shape index: {}]
  %s1 = inlined_call_operand.hbm [shape: f32[1,512], index: 1, kind: input, shape index: {}]
  %s2 = inlined_call_operand.hbm [shape: f32[1,8,128], index: 2, kind: output, shape index: {}]
  %s3 = sld [smem:[#allocation0]]
  $region26: #{tpu_custom_call.1} parent=0
    _
  %s5 = ssub.s32 1, %s3
  %s6 = scalar_select 0, %s5, %s3
  $region1: #{tpu_custom_call.1} parent=0
    #allocation2 [shape = 'u8[2048]{0}', space=vmem, size = 0x800, scoped, tag = 'input window, operand 0, single buffered']
    #allocation3 [shape = 's32[1]{0}', space=sflag, size = 0x4, scoped, tag = 'scoped memory for tpu_custom_call.1']
    #allocation4 [shape = 's32[1]{0}', space=sflag, size = 0x4, scoped, tag = 'scoped memory for tpu_custom_call.1']
    #allocation5 [shape = 'u8[2048]{0}', space=vmem, size = 0x800, scoped, tag = 'input window, operand 1, single buffered']
    #allocation6 [shape = 's32[1]{0}', space=sflag, size = 0x4, scoped, tag = 'scoped memory for tpu_custom_call.1']
    #allocation7 [shape = 'u8[4096]{0}', space=vmem, size = 0x1000, scoped, tag = 'output window, operand 0, single buffered']
    %7 = vsyncpa [#allocation3], 0
    %8 = vsyncpa [#allocation6], 0
    %9 = vsyncpa [#allocation4], 0
    // Predicated region
    $region2: #{tpu_custom_call.1} parent=1 // pred_check
      _
    $region3: #{tpu_custom_call.1} parent=1 // pred_check_branch
      %11 = sbr.rel (0) target = $region5
    $region4: #{tpu_custom_call.1} parent=1 // pred_region
      %13 = vsyncadd [#allocation3], 0
      %s15 = sshll.u32 %s0, 4
      %s16 = int_to_ptr.hbm [resolvable:$true] %s15
      %s17 = sshll.u32 [#allocation2], 4
      %s18 = int_to_ptr.vmem [resolvable:$true] %s17
      %20 = dma.hbm_to_vmem [thread:$0]  %s16, 64, %s18, [#allocation3]
    $region5: #{tpu_custom_call.1} parent=1 // pred_fallthru
      _
    // Predicated region
    $region6: #{tpu_custom_call.1} parent=1 // pred_check
      _
    $region7: #{tpu_custom_call.1} parent=1 // pred_check_branch
      %22 = sbr.rel (0) target = $region9
    $region8: #{tpu_custom_call.1} parent=1 // pred_region
      %24 = vsyncadd [#allocation6], 0
      %s26 = sshll.u32 %s1, 4
      %s27 = int_to_ptr.hbm [resolvable:$true] %s26
      %s28 = sshll.u32 [#allocation5], 4
      %s29 = int_to_ptr.vmem [resolvable:$true] %s28
      %31 = dma.hbm_to_vmem [thread:$0]  %s27, 64, %s29, [#allocation6]
    $region9: #{tpu_custom_call.1} parent=1 // pred_fallthru
      _
    // Predicated region
    $region10: #{tpu_custom_call.1} parent=1 // pred_check
      _
    $region11: #{tpu_custom_call.1} parent=1 // pred_check_branch
      %33 = sbr.rel (0) target = $region13
    $region12: #{tpu_custom_call.1} parent=1 // pred_region
      %35 = dma.done [#allocation3], 64
    $region13: #{tpu_custom_call.1} parent=1 // pred_fallthru
      _
    // Predicated region
    $region14: #{tpu_custom_call.1} parent=1 // pred_check
      _
    $region15: #{tpu_custom_call.1} parent=1 // pred_check_branch
      %37 = sbr.rel (0) target = $region17
    $region16: #{tpu_custom_call.1} parent=1 // pred_region
      %39 = dma.done [#allocation6], 64
    $region17: #{tpu_custom_call.1} parent=1 // pred_fallthru
      _
    %v40 = vld [vmem:[#allocation2] sm:$0xf]
    %v41 = vld [vmem:[#allocation5] sm:$0xf]
    %v42 = vmax.f32 %v40, 0.0
    %v43 = vmul.f32 %v40, %v41
    %v44 = vsub.f32 %v42, %v43
    %v45 = vand.u32 2147483647, %v40
    %v46 = vsub.f32 0.0, %v45
    %v47 = vmul.f32 %v46, 1.442695
    %v48 = vpow.pop %v47
    %v49 = vadd.f32 %v48, 1.0
    %v50 = vlog2.pop %v49
    %v51 = vmul.f32 %v50, 0.6931472
    %v52 = vmul.f32 -0.5, %v48
    %v53 = vadd.f32 %v52, 1.0
    %v54 = vmul.f32 %v53, %v48
    %v55 = vand.u32 2147483647, %v48
    %vm56 = vcmp.lt.f32.partialorder %v55, 0.0004427343
    %v57 = vsel %vm56, %v54, %v51
    %v58 = vadd.f32 %v44, %v57
    %v60 = vperm.slane %v58, 0
    %v61 = vperm.slane %v58, 1
    %v62 = vperm.slane %v58, 2
    %v63 = vperm.slane %v58, 3
    %vm68 = vcmask 1040384
    %v69 = vsel %vm68, %v60, 0.0
    %v70 = vsel %vm68, %v61, 0.0
    %v71 = vadd.f32 %v69, %v70
    %v72 = vsel %vm68, %v62, 0.0
    %v73 = vadd.f32 %v71, %v72
    %v74 = vsel %vm68, %v63, 0.0
    %v75 = vadd.f32 %v73, %v74
    %76 = vadd.xlane.f32.xlu0 %v75
    %v77 = vpop.xlane.xlu0 %76
    %v78 = vrot.slane %v77, 4
    %v79 = vadd.f32 %v77, %v78
    %v80 = vrot.slane %v79, 2
    %v81 = vadd.f32 %v79, %v80
    %v82 = vrot.slane %v81, 1
    %v83 = vadd.f32 %v81, %v82
    %s84 = vtos %v83
    %v85 = vstv %s84
    %86 = vst [vmem:[#allocation7] sm:$0xff] %v85
    // Predicated region
    $region18: #{tpu_custom_call.1} parent=1 // pred_check
      _
    $region19: #{tpu_custom_call.1} parent=1 // pred_check_branch
      %88 = sbr.rel (0) target = $region21
    $region20: #{tpu_custom_call.1} parent=1 // pred_region
      %90 = vsyncadd [#allocation4], 0
      %s92 = sshll.u32 [#allocation7], 4
      %s93 = int_to_ptr.vmem [resolvable:$true] %s92
      %s94 = sshll.u32 %s2, 4
      %s95 = int_to_ptr.hbm [resolvable:$true] %s94
      %97 = dma.vmem_to_hbm [thread:$0]  %s93, 128, %s95, [#allocation4]
    $region21: #{tpu_custom_call.1} parent=1 // pred_fallthru
      _
    // Predicated region
    $region22: #{tpu_custom_call.1} parent=1 // pred_check
      _
    $region23: #{tpu_custom_call.1} parent=1 // pred_check_branch
      %99 = sbr.rel (0) target = $region25
    $region24: #{tpu_custom_call.1} parent=1 // pred_region
      %101 = dma.done [#allocation4], 128
    $region25: #{tpu_custom_call.1} parent=1 // pred_fallthru
      _
    %102 = vsyncpa [#allocation3], 1
    %103 = vsyncpa [#allocation6], 1
    %104 = vsyncpa [#allocation4], 1

</llo_original>
